<compile_context>
chip_gen: v6e
topology: v6e:2x2x1
jax: 0.10.0
libtpu: 0.0.40
codegen_flags: <defaults>
</compile_context>

<pallas_src>
import functools

import jax
import jax.numpy as jnp
from jax import lax
from jax.experimental import pallas as pl
from jax.experimental.pallas import tpu as pltpu


def _gelu(x, approx):
    if approx == "tanh":
        # tanh-approx GELU: routes the transcendental through the EUP slot.
        c = jnp.asarray(0.7978845608028654, dtype=x.dtype)  # sqrt(2/pi)
        return 0.5 * x * (1.0 + jnp.tanh(c * (x + 0.044715 * x * x * x)))
    # PyTorch nn.GELU() default (approximate='none'): 0.5*x*(1+erf(x/sqrt(2)))
    inv_sqrt2 = jnp.asarray(0.7071067811865476, dtype=x.dtype)
    return 0.5 * x * (1.0 + lax.erf(x * inv_sqrt2))


def _freq_mlp_kernel(x_ref, w1_ref, b1_ref, w2_ref, b2_ref, o_ref,
                     *, bg_tile, gelu_approx):
    # x_ref : (bg_tile, 2gc, tn)  activation block, tokens on the lane axis
    # w1    : (hid, 2gc), b1: (hid, 1), w2: (2gc, hid), b2: (2gc, 1)  (f32, VMEM-resident)
    # o_ref : (bg_tile, 2gc, tn)  lane-dense full-sublane output block
    w1 = w1_ref[...]
    b1 = b1_ref[...]
    w2 = w2_ref[...]
    b2 = b2_ref[...]
    for bt in range(bg_tile):                      # short static loop; weights shared
        x = x_ref[bt].astype(jnp.float32)          # (2gc, tn)
        h = jnp.dot(w1, x, preferred_element_type=jnp.float32) + b1
        h = _gelu(h, gelu_approx)
        y = jnp.dot(w2, h, preferred_element_type=jnp.float32) + b2
        o_ref[bt] = y.astype(o_ref.dtype)


def _pick_tile_n(hw, max_tile=2048):
    """Token-tile width (lane axis): the full row when small; otherwise prefer
    a multiple of 128 that divides hw (no masked tail), else the candidate in
    [max_tile/2, max_tile] with the least padded tail."""
    if hw <= max_tile:
        return hw
    top = max(128, max_tile - (max_tile % 128))
    for tn in range(top, 127, -128):
        if hw % tn == 0:
            return tn
    best_tn, best_waste = top, None
    for tn in range(top, max(top // 2, 128) - 1, -128):
        waste = (-hw) % tn
        if best_waste is None or waste < best_waste:
            best_tn, best_waste = tn, waste
    return best_tn


def _pick_bg_tile(bg, max_tile=8):
    """Rows of B*G folded into one grid step (amortizes per-step overhead)."""
    if bg <= max_tile:
        return bg
    for t in range(max_tile, 1, -1):
        if bg % t == 0:
            return t
    return max_tile  # ragged tail masked by Pallas


def freq_mlp(xf, w1, b1, w2, b2, *, max_tile_n=2048, max_bg_tile=8,
             gelu_approx="none"):
    """xf: [B*G, 2*gc, H*W] activation slab (real||imag along the channel axis).
    Weights in PyTorch nn.Linear layout: w1 [hid, 2gc], b1 [hid],
    w2 [2gc, hid], b2 [2gc].  Returns y: [B*G, 2*gc, H*W] in xf.dtype."""
    bg, c2, hw = xf.shape
    hid = w1.shape[0]
    tn = _pick_tile_n(hw, max_tile_n)
    bgt = _pick_bg_tile(bg, max_bg_tile)
    # Keep at least 2 grid steps when possible so v7x's 2 TensorCores both get work.
    if pl.cdiv(bg, bgt) * pl.cdiv(hw, tn) < 2 and bgt > 1:
        bgt = max(1, bgt // 2)
    grid = (pl.cdiv(bg, bgt), pl.cdiv(hw, tn))

    w1 = w1.astype(jnp.float32)
    b1c = b1.astype(jnp.float32).reshape(hid, 1)
    w2 = w2.astype(jnp.float32)
    b2c = b2.astype(jnp.float32).reshape(c2, 1)

    act_spec = pl.BlockSpec((bgt, c2, tn), lambda i, j: (i, 0, j))
    const = lambda i, j: (0, 0)

    # VMEM budget: double-buffered activation blocks (in + out, sublane-padded),
    # ~3 live copies of the (hid, tn) f32 hidden intermediate, f32 upcast row
    # temporaries, resident weights; clamp to 48 MiB so it also fits v7x's
    # 64 MiB VMEM (v5e/v6e have 128 MiB and never hit the clamp at these sizes).
    pad8 = lambda n: -(-n // 8) * 8
    act_bytes = 2 * 2 * bgt * pad8(c2) * tn * xf.dtype.itemsize
    inter_bytes = 3 * pad8(hid) * tn * 4
    row_bytes = 2 * pad8(c2) * tn * 4
    wgt_bytes = 4 * (pad8(hid) * pad8(c2) + pad8(hid) + pad8(c2)) * 4
    vmem_limit = int(min(max(act_bytes + inter_bytes + row_bytes + wgt_bytes
                             + (4 << 20), 16 << 20), 48 << 20))

    kernel = functools.partial(_freq_mlp_kernel, bg_tile=bgt,
                               gelu_approx=gelu_approx)
    return pl.pallas_call(
        kernel,
        out_shape=jax.ShapeDtypeStruct((bg, c2, hw), xf.dtype),
        grid_spec=pltpu.PrefetchScalarGridSpec(
            num_scalar_prefetch=0,
            grid=grid,
            in_specs=[
                act_spec,                         # activations (bf16/f32)
                pl.BlockSpec((hid, c2), const),   # w1 (VMEM-resident)
                pl.BlockSpec((hid, 1), const),    # b1
                pl.BlockSpec((c2, hid), const),   # w2
                pl.BlockSpec((c2, 1), const),     # b2
            ],
            out_specs=act_spec,
        ),
        compiler_params=pltpu.CompilerParams(
            dimension_semantics=("parallel", "parallel"),
            vmem_limit_bytes=vmem_limit,
        ),
    )(xf, w1, b1c, w2, b2c)


def afno_block_forward(x, params, *, num_groups, act_dtype=jnp.bfloat16,
                       gelu_approx="none"):
    """x: [B, C, H, W] f32 -> [B, C, H, W] f32 (matches PyTorch AFNOBlock)."""
    B, C, H, W = x.shape
    assert C % num_groups == 0, "C must be divisible by num_groups"
    gc = C // num_groups
    G = num_groups

    # TODO(synk): fft2/ifft2 have no Pallas TPU equivalent; they stay in jnp.fft.
    x_fft = jnp.fft.fft2(x, norm="ortho")                        # [B,C,H,W] complex
    xr = jnp.real(x_fft).reshape(B, G, gc, H * W)
    xi = jnp.imag(x_fft).reshape(B, G, gc, H * W)
    # One [B*G, 2*gc, H*W] slab (real||imag) -> full-8-sublane, lane-dense blocks.
    xf = jnp.concatenate([xr, xi], axis=2).reshape(B * G, 2 * gc, H * W)
    xf = xf.astype(act_dtype)

    y = freq_mlp(xf, params["w1"], params["b1"], params["w2"], params["b2"],
                 gelu_approx=gelu_approx)

    y = y.astype(jnp.float32).reshape(B, G, 2 * gc, H, W)
    y_fft = (y[:, :, :gc] + 1j * y[:, :, gc:]).reshape(B, C, H, W)
    # NOTE: rfft2/irfft2 would halve the token count, but the learned MLP is
    # not conjugation-equivariant, so the full-spectrum ifft2(...).real is kept
    # for exact parity with the PyTorch module.
    x_out = jnp.fft.ifft2(y_fft, norm="ortho").real
    return x_out.astype(x.dtype)


def afno_block_forward_ref(x, params, *, num_groups):
    """Pure-JAX reference mirroring the PyTorch code path (for validation)."""
    B, C, H, W = x.shape
    gc = C // num_groups
    w1, b1, w2, b2 = params["w1"], params["b1"], params["w2"], params["b2"]
    x_fft = jnp.fft.fft2(x, norm="ortho").reshape(B, num_groups, gc, H, W)
    freq = jnp.concatenate([x_fft.real, x_fft.imag], axis=2)        # [B,G,2gc,H,W]
    freq = jnp.transpose(freq, (0, 1, 3, 4, 2))                     # [B,G,H,W,2gc]
    h = jnp.einsum("bghwc,oc->bghwo", freq, w1, precision="highest") + b1
    h = _gelu(h, "none")
    y = jnp.einsum("bghwo,co->bghwc", h, w2, precision="highest") + b2
    y = jnp.transpose(y, (0, 1, 4, 2, 3))                           # [B,G,2gc,H,W]
    real, imag = jnp.split(y, 2, axis=2)
    y_fft = (real + 1j * imag).reshape(B, C, H, W)
    return jnp.fft.ifft2(y_fft, norm="ortho").real


def init_params(key, dim, hidden_dim, num_groups):
    gc = dim // num_groups
    cin = 2 * gc
    k1, k2, k3, k4 = jax.random.split(key, 4)
    # Deterministic synthetic init, PyTorch nn.Linear weight layout [out, in].
    w1 = jax.random.normal(k1, (hidden_dim, cin), jnp.float32) * (1.0 / jnp.sqrt(cin))
    b1 = jax.random.normal(k2, (hidden_dim,), jnp.float32) * 0.01
    w2 = jax.random.normal(k3, (cin, hidden_dim), jnp.float32) * (1.0 / jnp.sqrt(hidden_dim))
    b2 = jax.random.normal(k4, (cin,), jnp.float32) * 0.01
    return {"w1": w1, "b1": b1, "w2": w2, "b2": b2}


if __name__ == "__main__":
    key = jax.random.PRNGKey(0)
    k_x, k_p = jax.random.split(key)

    B, C, H, W = 2, 16, 16, 16      # dim = 16
    num_groups = 4                  # group_channels = 4 -> Cin = 2*gc = 8
    hidden_dim = 32

    x = jax.random.normal(k_x, (B, C, H, W), jnp.float32)
    params = init_params(k_p, C, hidden_dim, num_groups)

    y_ref = afno_block_forward_ref(x, params, num_groups=num_groups)

    # Strict-parity path: f32 activation I/O + exact-erf GELU.
    fwd_f32 = jax.jit(functools.partial(afno_block_forward, num_groups=num_groups,
                                        act_dtype=jnp.float32, gelu_approx="none"))
    y32 = fwd_f32(x, params)
    jax.block_until_ready(y32)
    assert y32.shape == (B, C, H, W) and y32.dtype == jnp.float32
    err32 = float(jnp.max(jnp.abs(y32 - y_ref)))
    assert err32 < 1e-3, f"f32-path mismatch vs reference: max abs err {err32}"

    # Fast path: bf16 activation I/O (compute stays f32), looser tolerance.
    fwd_bf16 = jax.jit(functools.partial(afno_block_forward, num_groups=num_groups,
                                         act_dtype=jnp.bfloat16, gelu_approx="none"))
    y16 = fwd_bf16(x, params)
    jax.block_until_ready(y16)
    assert y16.shape == (B, C, H, W) and y16.dtype == jnp.float32
    err16 = float(jnp.max(jnp.abs(y16 - y_ref)))
    assert err16 < 5e-2, f"bf16-path mismatch vs reference: max abs err {err16}"

    print("KERNEL_OK")
</pallas_src>

<mosaic_0001>
module attributes {stable_mosaic.version = 11 : i64} {
  func.func @_freq_mlp_kernel(%arg0: i32, %arg1: i32, %arg2: memref<4x8x256xf32, #tpu.memory_space<vmem>>, %arg3: memref<32x8xf32, #tpu.memory_space<vmem>>, %arg4: memref<32x1xf32, #tpu.memory_space<vmem>>, %arg5: memref<8x32xf32, #tpu.memory_space<vmem>>, %arg6: memref<8x1xf32, #tpu.memory_space<vmem>>, %arg7: memref<4x8x256xf32, #tpu.memory_space<vmem>>) attributes {dimension_semantics = [#tpu.dimension_semantics<parallel>, #tpu.dimension_semantics<parallel>], iteration_bounds = array<i64: 2, 1>, scalar_prefetch = 0 : i64, scratch_operands = 0 : i64, tpu.core_type = #tpu.core_type<tc>, window_params = [{transform_indices = @transform_0, window_bounds = array<i64: 4, 8, 256>}, {pipeline_mode = #tpu.pipeline_mode<synchronous>, transform_indices = @transform_1, window_bounds = array<i64: 32, 8>}, {pipeline_mode = #tpu.pipeline_mode<synchronous>, transform_indices = @transform_2, window_bounds = array<i64: 32, 1>}, {pipeline_mode = #tpu.pipeline_mode<synchronous>, transform_indices = @transform_3, window_bounds = array<i64: 8, 32>}, {pipeline_mode = #tpu.pipeline_mode<synchronous>, transform_indices = @transform_4, window_bounds = array<i64: 8, 1>}, {transform_indices = @transform_5, window_bounds = array<i64: 4, 8, 256>}]} {
    %c0 = arith.constant 0 : index
    %c0_0 = arith.constant 0 : index
    %0 = vector.load %arg3[%c0, %c0_0] : memref<32x8xf32, #tpu.memory_space<vmem>>, vector<32x8xf32>
    %c0_1 = arith.constant 0 : index
    %c0_2 = arith.constant 0 : index
    %1 = vector.load %arg4[%c0_1, %c0_2] : memref<32x1xf32, #tpu.memory_space<vmem>>, vector<32x1xf32>
    %c0_3 = arith.constant 0 : index
    %c0_4 = arith.constant 0 : index
    %2 = vector.load %arg5[%c0_3, %c0_4] : memref<8x32xf32, #tpu.memory_space<vmem>>, vector<8x32xf32>
    %c0_5 = arith.constant 0 : index
    %c0_6 = arith.constant 0 : index
    %3 = vector.load %arg6[%c0_5, %c0_6] : memref<8x1xf32, #tpu.memory_space<vmem>>, vector<8x1xf32>
    %c0_7 = arith.constant 0 : index
    %c0_8 = arith.constant 0 : index
    %c0_9 = arith.constant 0 : index
    %4 = vector.load %arg2[%c0_7, %c0_8, %c0_9] : memref<4x8x256xf32, #tpu.memory_space<vmem>>, vector<1x8x256xf32>
    %5 = vector.shape_cast %4 : vector<1x8x256xf32> to vector<8x256xf32>
    %cst = arith.constant dense<0.000000e+00> : vector<32x256xf32>
    %6 = tpu.matmul %0, %5, %cst {dimension_numbers = #tpu.dot_dimension_numbers<[1], [0], [0], [1], [0, 0, 1, 1], [], []>} : vector<32x8xf32>, vector<8x256xf32>, vector<32x256xf32> -> vector<32x256xf32>
    %7 = vector.broadcast %1 : vector<32x1xf32> to vector<32x256xf32>
    %8 = arith.addf %6, %7 : vector<32x256xf32>
    %cst_10 = arith.constant 5.000000e-01 : f32
    %9 = vector.broadcast %cst_10 : f32 to vector<32x256xf32>
    %10 = arith.mulf %9, %8 : vector<32x256xf32>
    %cst_11 = arith.constant 0.707106769 : f32
    %11 = vector.broadcast %cst_11 : f32 to vector<32x256xf32>
    %12 = arith.mulf %8, %11 : vector<32x256xf32>
    %13 = math.erf %12 : vector<32x256xf32>
    %cst_12 = arith.constant 1.000000e+00 : f32
    %14 = vector.broadcast %cst_12 : f32 to vector<32x256xf32>
    %15 = arith.addf %14, %13 : vector<32x256xf32>
    %16 = arith.mulf %10, %15 : vector<32x256xf32>
    %cst_13 = arith.constant dense<0.000000e+00> : vector<8x256xf32>
    %17 = tpu.matmul %2, %16, %cst_13 {dimension_numbers = #tpu.dot_dimension_numbers<[1], [0], [0], [1], [0, 0, 1, 1], [], []>} : vector<8x32xf32>, vector<32x256xf32>, vector<8x256xf32> -> vector<8x256xf32>
    %18 = vector.broadcast %3 : vector<8x1xf32> to vector<8x256xf32>
    %19 = arith.addf %17, %18 : vector<8x256xf32>
    %c0_14 = arith.constant 0 : index
    %c0_15 = arith.constant 0 : index
    %c0_16 = arith.constant 0 : index
    %20 = vector.load %arg7[%c0_14, %c0_15, %c0_16] : memref<4x8x256xf32, #tpu.memory_space<vmem>>, vector<1x8x256xf32>
    %21 = vector.shape_cast %20 : vector<1x8x256xf32> to vector<8x256xf32>
    %22 = vector.shape_cast %19 : vector<8x256xf32> to vector<1x8x256xf32>
    tpu.vector_store %arg7[%c0_14, %c0_15, %c0_16], %22 {strides = array<i32>} : memref<4x8x256xf32, #tpu.memory_space<vmem>>, vector<1x8x256xf32>,
    %c1 = arith.constant 1 : index
    %c0_17 = arith.constant 0 : index
    %c0_18 = arith.constant 0 : index
    %23 = vector.load %arg2[%c1, %c0_17, %c0_18] : memref<4x8x256xf32, #tpu.memory_space<vmem>>, vector<1x8x256xf32>
    %24 = vector.shape_cast %23 : vector<1x8x256xf32> to vector<8x256xf32>
    %cst_19 = arith.constant dense<0.000000e+00> : vector<32x256xf32>
    %25 = tpu.matmul %0, %24, %cst_19 {dimension_numbers = #tpu.dot_dimension_numbers<[1], [0], [0], [1], [0, 0, 1, 1], [], []>} : vector<32x8xf32>, vector<8x256xf32>, vector<32x256xf32> -> vector<32x256xf32>
    %26 = vector.broadcast %1 : vector<32x1xf32> to vector<32x256xf32>
    %27 = arith.addf %25, %26 : vector<32x256xf32>
    %cst_20 = arith.constant 5.000000e-01 : f32
    %28 = vector.broadcast %cst_20 : f32 to vector<32x256xf32>
    %29 = arith.mulf %28, %27 : vector<32x256xf32>
    %cst_21 = arith.constant 0.707106769 : f32
    %30 = vector.broadcast %cst_21 : f32 to vector<32x256xf32>
    %31 = arith.mulf %27, %30 : vector<32x256xf32>
    %32 = math.erf %31 : vector<32x256xf32>
    %cst_22 = arith.constant 1.000000e+00 : f32
    %33 = vector.broadcast %cst_22 : f32 to vector<32x256xf32>
    %34 = arith.addf %33, %32 : vector<32x256xf32>
    %35 = arith.mulf %29, %34 : vector<32x256xf32>
    %cst_23 = arith.constant dense<0.000000e+00> : vector<8x256xf32>
    %36 = tpu.matmul %2, %35, %cst_23 {dimension_numbers = #tpu.dot_dimension_numbers<[1], [0], [0], [1], [0, 0, 1, 1], [], []>} : vector<8x32xf32>, vector<32x256xf32>, vector<8x256xf32> -> vector<8x256xf32>
    %37 = vector.broadcast %3 : vector<8x1xf32> to vector<8x256xf32>
    %38 = arith.addf %36, %37 : vector<8x256xf32>
    %c1_24 = arith.constant 1 : index
    %c0_25 = arith.constant 0 : index
    %c0_26 = arith.constant 0 : index
    %39 = vector.load %arg7[%c1_24, %c0_25, %c0_26] : memref<4x8x256xf32, #tpu.memory_space<vmem>>, vector<1x8x256xf32>
    %40 = vector.shape_cast %39 : vector<1x8x256xf32> to vector<8x256xf32>
    %41 = vector.shape_cast %38 : vector<8x256xf32> to vector<1x8x256xf32>
    tpu.vector_store %arg7[%c1_24, %c0_25, %c0_26], %41 {strides = array<i32>} : memref<4x8x256xf32, #tpu.memory_space<vmem>>, vector<1x8x256xf32>,
    %c2 = arith.constant 2 : index
    %c0_27 = arith.constant 0 : index
    %c0_28 = arith.constant 0 : index
    %42 = vector.load %arg2[%c2, %c0_27, %c0_28] : memref<4x8x256xf32, #tpu.memory_space<vmem>>, vector<1x8x256xf32>
    %43 = vector.shape_cast %42 : vector<1x8x256xf32> to vector<8x256xf32>
    %cst_29 = arith.constant dense<0.000000e+00> : vector<32x256xf32>
    %44 = tpu.matmul %0, %43, %cst_29 {dimension_numbers = #tpu.dot_dimension_numbers<[1], [0], [0], [1], [0, 0, 1, 1], [], []>} : vector<32x8xf32>, vector<8x256xf32>, vector<32x256xf32> -> vector<32x256xf32>
    %45 = vector.broadcast %1 : vector<32x1xf32> to vector<32x256xf32>
    %46 = arith.addf %44, %45 : vector<32x256xf32>
    %cst_30 = arith.constant 5.000000e-01 : f32
    %47 = vector.broadcast %cst_30 : f32 to vector<32x256xf32>
    %48 = arith.mulf %47, %46 : vector<32x256xf32>
    %cst_31 = arith.constant 0.707106769 : f32
    %49 = vector.broadcast %cst_31 : f32 to vector<32x256xf32>
    %50 = arith.mulf %46, %49 : vector<32x256xf32>
    %51 = math.erf %50 : vector<32x256xf32>
    %cst_32 = arith.constant 1.000000e+00 : f32
    %52 = vector.broadcast %cst_32 : f32 to vector<32x256xf32>
    %53 = arith.addf %52, %51 : vector<32x256xf32>
    %54 = arith.mulf %48, %53 : vector<32x256xf32>
    %cst_33 = arith.constant dense<0.000000e+00> : vector<8x256xf32>
    %55 = tpu.matmul %2, %54, %cst_33 {dimension_numbers = #tpu.dot_dimension_numbers<[1], [0], [0], [1], [0, 0, 1, 1], [], []>} : vector<8x32xf32>, vector<32x256xf32>, vector<8x256xf32> -> vector<8x256xf32>
    %56 = vector.broadcast %3 : vector<8x1xf32> to vector<8x256xf32>
    %57 = arith.addf %55, %56 : vector<8x256xf32>
    %c2_34 = arith.constant 2 : index
    %c0_35 = arith.constant 0 : index
    %c0_36 = arith.constant 0 : index
    %58 = vector.load %arg7[%c2_34, %c0_35, %c0_36] : memref<4x8x256xf32, #tpu.memory_space<vmem>>, vector<1x8x256xf32>
    %59 = vector.shape_cast %58 : vector<1x8x256xf32> to vector<8x256xf32>
    %60 = vector.shape_cast %57 : vector<8x256xf32> to vector<1x8x256xf32>
    tpu.vector_store %arg7[%c2_34, %c0_35, %c0_36], %60 {strides = array<i32>} : memref<4x8x256xf32, #tpu.memory_space<vmem>>, vector<1x8x256xf32>,
    %c3 = arith.constant 3 : index
    %c0_37 = arith.constant 0 : index
    %c0_38 = arith.constant 0 : index
    %61 = vector.load %arg2[%c3, %c0_37, %c0_38] : memref<4x8x256xf32, #tpu.memory_space<vmem>>, vector<1x8x256xf32>
    %62 = vector.shape_cast %61 : vector<1x8x256xf32> to vector<8x256xf32>
    %cst_39 = arith.constant dense<0.000000e+00> : vector<32x256xf32>
    %63 = tpu.matmul %0, %62, %cst_39 {dimension_numbers = #tpu.dot_dimension_numbers<[1], [0], [0], [1], [0, 0, 1, 1], [], []>} : vector<32x8xf32>, vector<8x256xf32>, vector<32x256xf32> -> vector<32x256xf32>
    %64 = vector.broadcast %1 : vector<32x1xf32> to vector<32x256xf32>
    %65 = arith.addf %63, %64 : vector<32x256xf32>
    %cst_40 = arith.constant 5.000000e-01 : f32
    %66 = vector.broadcast %cst_40 : f32 to vector<32x256xf32>
    %67 = arith.mulf %66, %65 : vector<32x256xf32>
    %cst_41 = arith.constant 0.707106769 : f32
    %68 = vector.broadcast %cst_41 : f32 to vector<32x256xf32>
    %69 = arith.mulf %65, %68 : vector<32x256xf32>
    %70 = math.erf %69 : vector<32x256xf32>
    %cst_42 = arith.constant 1.000000e+00 : f32
    %71 = vector.broadcast %cst_42 : f32 to vector<32x256xf32>
    %72 = arith.addf %71, %70 : vector<32x256xf32>
    %73 = arith.mulf %67, %72 : vector<32x256xf32>
    %cst_43 = arith.constant dense<0.000000e+00> : vector<8x256xf32>
    %74 = tpu.matmul %2, %73, %cst_43 {dimension_numbers = #tpu.dot_dimension_numbers<[1], [0], [0], [1], [0, 0, 1, 1], [], []>} : vector<8x32xf32>, vector<32x256xf32>, vector<8x256xf32> -> vector<8x256xf32>
    %75 = vector.broadcast %3 : vector<8x1xf32> to vector<8x256xf32>
    %76 = arith.addf %74, %75 : vector<8x256xf32>
    %c3_44 = arith.constant 3 : index
    %c0_45 = arith.constant 0 : index
    %c0_46 = arith.constant 0 : index
    %77 = vector.load %arg7[%c3_44, %c0_45, %c0_46] : memref<4x8x256xf32, #tpu.memory_space<vmem>>, vector<1x8x256xf32>
    %78 = vector.shape_cast %77 : vector<1x8x256xf32> to vector<8x256xf32>
    %79 = vector.shape_cast %76 : vector<8x256xf32> to vector<1x8x256xf32>
    tpu.vector_store %arg7[%c3_44, %c0_45, %c0_46], %79 {strides = array<i32>} : memref<4x8x256xf32, #tpu.memory_space<vmem>>, vector<1x8x256xf32>,
    return
  }
  func.func @transform_0(%arg0: i32, %arg1: i32) -> (i32, i32, i32) {
    %c0_i32 = arith.constant 0 : i32
    %c0_i32_0 = arith.constant 0 : i32
    return %arg0, %c0_i32, %arg1 : i32, i32, i32
  }
  func.func @transform_1(%arg0: i32, %arg1: i32) -> (i32, i32) {
    %c0_i32 = arith.constant 0 : i32
    %c0_i32_0 = arith.constant 0 : i32
    %c0_i32_1 = arith.constant 0 : i32
    return %c0_i32, %c0_i32_0 : i32, i32
  }
  func.func @transform_2(%arg0: i32, %arg1: i32) -> (i32, i32) {
    %c0_i32 = arith.constant 0 : i32
    %c0_i32_0 = arith.constant 0 : i32
    %c0_i32_1 = arith.constant 0 : i32
    return %c0_i32, %c0_i32_0 : i32, i32
  }
  func.func @transform_3(%arg0: i32, %arg1: i32) -> (i32, i32) {
    %c0_i32 = arith.constant 0 : i32
    %c0_i32_0 = arith.constant 0 : i32
    %c0_i32_1 = arith.constant 0 : i32
    return %c0_i32, %c0_i32_0 : i32, i32
  }
  func.func @transform_4(%arg0: i32, %arg1: i32) -> (i32, i32) {
    %c0_i32 = arith.constant 0 : i32
    %c0_i32_0 = arith.constant 0 : i32
    %c0_i32_1 = arith.constant 0 : i32
    return %c0_i32, %c0_i32_0 : i32, i32
  }
  func.func @transform_5(%arg0: i32, %arg1: i32) -> (i32, i32, i32) {
    %c0_i32 = arith.constant 0 : i32
    %c0_i32_0 = arith.constant 0 : i32
    return %arg0, %c0_i32, %arg1 : i32, i32, i32
  }
}

</mosaic_0001>

<llo_original>
// kernel: afno_block_forward.1
$region0: #{afno_block_forward.1}
  #allocation0 [shape = 'u32[]', space=smem, size = 0x4, offset = 0x4, fixed_abs, tag = 'smem constant byte address 0x4 - core index']
  #allocation1 [shape = 'u32[144,128]{1,0:T(1,128)}', space=vmem, size = 0x12000, scoped, tag = 'internal scratch']
  %s0 = inlined_call_operand.vmem [shape: f32[8,8,256], index: 0, kind: input, shape index: {}]
  %s1 = inlined_call_operand.vmem [shape: f32[32,8], index: 1, kind: input, shape index: {}]
  %s2 = inlined_call_operand.vmem [shape: f32[32,1], index: 2, kind: input, shape index: {}]
  %s3 = inlined_call_operand.vmem [shape: f32[8,32], index: 3, kind: input, shape index: {}]
  %s4 = inlined_call_operand.vmem [shape: f32[8,1], index: 4, kind: input, shape index: {}]
  %s5 = inlined_call_operand.vmem [shape: f32[8,8,256], index: 5, kind: output, shape index: {}]
  %s6 = sld [smem:[#allocation0]]
  $region53: #{afno_block_forward.1} parent=0
    _
  %s8 = ssub.s32 1, %s6
  %s9 = scalar_select 0, %s8, %s6
  loop: start=0, step=1, limit=4
  $region2: #{afno_block_forward.1} parent=0 // loop_pre_header
    _
  $region3: #{afno_block_forward.1} parent=0 // loop_header
    %s11 = sphi 0, %s15
    %p12 = scmp.ge.s32.totalorder %s11, 4
    %s18 = sphi 0, %s30
    %s19 = sphi 0, %s26
    %s20 = sphi 0, %s18
    %s21 = sphi 0, %s19
    %s22 = sphi 0, %s20
    %s23 = sphi 0, %s21
    %s35 = sphi 0, %s37
    %s38 = sphi 0, %s35
    %s39 = sphi 0, %s38
    %s55 = sphi 0, %s39
    %s59 = sphi 0, %s59
    %s61 = sphi 0, %s59
    %s62 = sphi 0, %s61
    %s76 = sphi 0, %s62
    %s80 = sphi 0, %s80
    %s82 = sphi 0, %s80
    %s83 = sphi 0, %s82
    %s97 = sphi 0, %s83
    %s101 = sphi 0, %s101
    %s103 = sphi 0, %s101
    %s104 = sphi 0, %s103
    %s118 = sphi 0, %s104
    %s122 = sphi 0, %s122
    %s124 = sphi 0, %s122
    %s125 = sphi 0, %s124
    %s139 = sphi 0, %s125
    %s147 = sphi 0, %s149
    %s150 = sphi 0, %s147
    %s151 = sphi 0, %s150
    %s167 = sphi 0, %s151
  $region4: #{afno_block_forward.1} parent=0 // loop_header_branch
    %14 = sbr.rel (%p12) target = $region8
  $region5: #{afno_block_forward.1} parent=0 // loop_body
    %s16 = ssub.s32 %s11, 1
    %s17 = ssub.s32 %s11, 2
    %s24 = sadd.s32 1, %s19
    %p25 = scmp.ge.s32.totalorder %s24, 1
    %s26 = scalar_select %p25, 0, %s24
    %s27 = sadd.s32 1, %s18
    %s28 = scalar_select %p25, %s27, %s18
    %p29 = scmp.ge.s32.totalorder %s28, 2
    %s30 = scalar_select %p29, 0, %s28
    %s31 = ssub.s32 %s18, %s30
    %s32 = ssub.s32 %s19, %s26
    %s33 = sor.u32 %s31, %s32
    %p34 = scmp.eq.s32.totalorder %s33, 0
    %s36 = sadd.s32 %s35, 1
    %s37 = scalar_select %p34, %s35, %s36
    %p40 = pneg %p34
    %p41 = scmp.eq.s32.totalorder %s11, 1
    %p42 = por %p40, %p41
    %p43 = scmp.ne.s32.totalorder %s35, %s38
    %p44 = scmp.eq.s32.totalorder %s11, 0
    %p45 = por %p43, %p44
    %p46 = scmp.ne.s32.totalorder %s35, %s38
    %p47 = scmp.eq.s32.totalorder %s16, 1
    %p48 = por %p46, %p47
    %p49 = scmp.ne.s32.totalorder %s38, %s39
    %p50 = scmp.eq.s32.totalorder %s16, 0
    %p51 = por %p49, %p50
    %p52 = scmp.ne.s32.totalorder %s38, %s39
    %p53 = scmp.eq.s32.totalorder %s17, 1
    %p54 = por %p52, %p53
    %p56 = scmp.ne.s32.totalorder %s39, %s55
    %p57 = scmp.eq.s32.totalorder %s17, 0
    %p58 = por %p56, %p57
    %s60 = sadd.s32 %s59, 1
    %p63 = scmp.eq.s32.totalorder %s11, 1
    %p64 = scmp.ne.s32.totalorder %s59, %s61
    %p65 = scmp.eq.s32.totalorder %s11, 0
    %p66 = por %p64, %p65
    %p67 = scmp.ne.s32.totalorder %s59, %s61
    %p68 = scmp.eq.s32.totalorder %s16, 1
    %p69 = por %p67, %p68
    %p70 = scmp.ne.s32.totalorder %s61, %s62
    %p71 = scmp.eq.s32.totalorder %s16, 0
    %p72 = por %p70, %p71
    %p73 = scmp.ne.s32.totalorder %s61, %s62
    %p74 = scmp.eq.s32.totalorder %s17, 1
    %p75 = por %p73, %p74
    %p77 = scmp.ne.s32.totalorder %s62, %s76
    %p78 = scmp.eq.s32.totalorder %s17, 0
    %p79 = por %p77, %p78
    %s81 = sadd.s32 %s80, 1
    %p84 = scmp.eq.s32.totalorder %s11, 1
    %p85 = scmp.ne.s32.totalorder %s80, %s82
    %p86 = scmp.eq.s32.totalorder %s11, 0
    %p87 = por %p85, %p86
    %p88 = scmp.ne.s32.totalorder %s80, %s82
    %p89 = scmp.eq.s32.totalorder %s16, 1
    %p90 = por %p88, %p89
    %p91 = scmp.ne.s32.totalorder %s82, %s83
    %p92 = scmp.eq.s32.totalorder %s16, 0
    %p93 = por %p91, %p92
    %p94 = scmp.ne.s32.totalorder %s82, %s83
    %p95 = scmp.eq.s32.totalorder %s17, 1
    %p96 = por %p94, %p95
    %p98 = scmp.ne.s32.totalorder %s83, %s97
    %p99 = scmp.eq.s32.totalorder %s17, 0
    %p100 = por %p98, %p99
    %s102 = sadd.s32 %s101, 1
    %p105 = scmp.eq.s32.totalorder %s11, 1
    %p106 = scmp.ne.s32.totalorder %s101, %s103
    %p107 = scmp.eq.s32.totalorder %s11, 0
    %p108 = por %p106, %p107
    %p109 = scmp.ne.s32.totalorder %s101, %s103
    %p110 = scmp.eq.s32.totalorder %s16, 1
    %p111 = por %p109, %p110
    %p112 = scmp.ne.s32.totalorder %s103, %s104
    %p113 = scmp.eq.s32.totalorder %s16, 0
    %p114 = por %p112, %p113
    %p115 = scmp.ne.s32.totalorder %s103, %s104
    %p116 = scmp.eq.s32.totalorder %s17, 1
    %p117 = por %p115, %p116
    %p119 = scmp.ne.s32.totalorder %s104, %s118
    %p120 = scmp.eq.s32.totalorder %s17, 0
    %p121 = por %p119, %p120
    %s123 = sadd.s32 %s122, 1
    %p126 = scmp.eq.s32.totalorder %s11, 1
    %p127 = scmp.ne.s32.totalorder %s122, %s124
    %p128 = scmp.eq.s32.totalorder %s11, 0
    %p129 = por %p127, %p128
    %p130 = scmp.ne.s32.totalorder %s122, %s124
    %p131 = scmp.eq.s32.totalorder %s16, 1
    %p132 = por %p130, %p131
    %p133 = scmp.ne.s32.totalorder %s124, %s125
    %p134 = scmp.eq.s32.totalorder %s16, 0
    %p135 = por %p133, %p134
    %p136 = scmp.ne.s32.totalorder %s124, %s125
    %p137 = scmp.eq.s32.totalorder %s17, 1
    %p138 = por %p136, %p137
    %p140 = scmp.ne.s32.totalorder %s125, %s139
    %p141 = scmp.eq.s32.totalorder %s17, 0
    %p142 = por %p140, %p141
    %s143 = ssub.s32 %s18, %s30
    %s144 = ssub.s32 %s19, %s26
    %s145 = sor.u32 %s143, %s144
    %p146 = scmp.eq.s32.totalorder %s145, 0
    %s148 = sadd.s32 %s147, 1
    %s149 = scalar_select %p146, %s147, %s148
    %p152 = pneg %p146
    %p153 = scmp.eq.s32.totalorder %s11, 1
    %p154 = por %p152, %p153
    %p155 = scmp.ne.s32.totalorder %s147, %s150
    %p156 = scmp.eq.s32.totalorder %s11, 0
    %p157 = por %p155, %p156
    %p158 = scmp.ne.s32.totalorder %s147, %s150
    %p159 = scmp.eq.s32.totalorder %s16, 1
    %p160 = por %p158, %p159
    %p161 = scmp.ne.s32.totalorder %s150, %s151
    %p162 = scmp.eq.s32.totalorder %s16, 0
    %p163 = por %p161, %p162
    %p164 = scmp.ne.s32.totalorder %s150, %s151
    %p165 = scmp.eq.s32.totalorder %s17, 1
    %p166 = por %p164, %p165
    %p168 = scmp.ne.s32.totalorder %s151, %s167
    %p169 = scmp.eq.s32.totalorder %s17, 0
    %p170 = por %p168, %p169
    %p171 = scmp.le.s32.totalorder 1, %s11
    %p172 = scmp.lt.s32.totalorder %s11, 3
    %p173 = pnand %p171, %p172
    %p174 = pneg %p173
    // Predicated region
    $region9: #{afno_block_forward.1} parent=5 // pred_check
      _
    $region10: #{afno_block_forward.1} parent=5 // pred_check_branch
      %176 = sbr.rel (%p173) target = $region12
    $region11: #{afno_block_forward.1} parent=5 // pred_region
      %s177 = ssub.s32 %s11, 1
      // Predicated region
      $region13: #{afno_block_forward.1} parent=11 // pred_check
        %p178 = pneg %p72
      $region14: #{afno_block_forward.1} parent=11 // pred_check_branch
        %180 = sbr.rel (%p178) target = $region16
      $region15: #{afno_block_forward.1} parent=11 // pred_region
        _
      $region16: #{afno_block_forward.1} parent=11 // pred_fallthru
        _
      // Predicated region
      $region17: #{afno_block_forward.1} parent=11 // pred_check
        %p181 = pneg %p93
      $region18: #{afno_block_forward.1} parent=11 // pred_check_branch
        %183 = sbr.rel (%p181) target = $region20
      $region19: #{afno_block_forward.1} parent=11 // pred_region
        _
      $region20: #{afno_block_forward.1} parent=11 // pred_fallthru
        _
      // Predicated region
      $region21: #{afno_block_forward.1} parent=11 // pred_check
        %p184 = pneg %p114
      $region22: #{afno_block_forward.1} parent=11 // pred_check_branch
        %186 = sbr.rel (%p184) target = $region24
      $region23: #{afno_block_forward.1} parent=11 // pred_region
        _
      $region24: #{afno_block_forward.1} parent=11 // pred_fallthru
        _
      // Predicated region
      $region25: #{afno_block_forward.1} parent=11 // pred_check
        %p187 = pneg %p135
      $region26: #{afno_block_forward.1} parent=11 // pred_check_branch
        %189 = sbr.rel (%p187) target = $region28
      $region27: #{afno_block_forward.1} parent=11 // pred_region
        _
      $region28: #{afno_block_forward.1} parent=11 // pred_fallthru
        _
    $region12: #{afno_block_forward.1} parent=5 // pred_fallthru
      _
    %p190 = scmp.lt.s32.totalorder %s11, 2
    // Predicated region
    $region29: #{afno_block_forward.1} parent=5 // pred_check
      %p191 = pneg %p190
    $region30: #{afno_block_forward.1} parent=5 // pred_check_branch
      %193 = sbr.rel (%p191) target = $region32
    $region31: #{afno_block_forward.1} parent=5 // pred_region
      // Predicated region
      $region33: #{afno_block_forward.1} parent=31 // pred_check
        %p194 = pneg %p45
      $region34: #{afno_block_forward.1} parent=31 // pred_check_branch
        %196 = sbr.rel (%p194) target = $region36
      $region35: #{afno_block_forward.1} parent=31 // pred_region
        %s197 = smul.u32 4, %s18
        %s198 = smul.u32 2, %s19
        %p199 = scmp.lt.s32.totalorder %s197, 7
        %s200 = scalar_select %p199, %s197, 7
        %p201 = scmp.lt.s32.totalorder %s198, 1
        %s202 = scalar_select %p201, %s198, 1
        %s203 = smul.addr %s200, 2
        %s204 = sadd.s32 %s202, %s203
        %s205 = smul.addr %s204, 8
        %s206 = scalar_lea.vmem %s0, %s205
        %s207 = smul.u32 4, %s18
        %s208 = smul.u32 2, %s19
      $region36: #{afno_block_forward.1} parent=31 // pred_fallthru
        _
    $region32: #{afno_block_forward.1} parent=5 // pred_fallthru
      _
    %p209 = scmp.le.s32.totalorder 1, %s11
    %p210 = scmp.lt.s32.totalorder %s11, 3
    %p211 = pnand %p209, %p210
    %p212 = pneg %p211
    // Predicated region
    $region37: #{afno_block_forward.1} parent=5 // pred_check
      _
    $region38: #{afno_block_forward.1} parent=5 // pred_check_branch
      %214 = sbr.rel (%p211) target = $region40
    $region39: #{afno_block_forward.1} parent=5 // pred_region
      %s215 = ssub.s32 %s11, 1
      %s216 = smul.u32 4, %s20
      %s217 = smul.u32 2, %s21
      %p218 = scmp.lt.s32.totalorder %s216, 7
      %s219 = scalar_select %p218, %s216, 7
      %p220 = scmp.lt.s32.totalorder %s217, 1
      %s221 = scalar_select %p220, %s217, 1
      %s222 = smul.addr %s219, 2
      %s223 = sadd.s32 %s221, %s222
      %s224 = smul.addr %s223, 8
      %s225 = scalar_lea.vmem %s0, %s224
      %p226 = pneg %p51
      %p227 = pneg %p48
      %p228 = pneg %p72
      %p229 = pneg %p69
      %p230 = pneg %p93
      %p231 = pneg %p90
      %p232 = pneg %p114
      %p233 = pneg %p111
      %p234 = pneg %p135
      %p235 = pneg %p132
      %p236 = pneg %p163
      %p237 = pneg %p160
      %s238 = smul.u32 4, %s20
      %s239 = smul.u32 2, %s21
      %p240 = scmp.lt.s32.totalorder %s238, 7
      %s241 = scalar_select %p240, %s238, 7
      %p242 = scmp.lt.s32.totalorder %s239, 1
      %s243 = scalar_select %p242, %s239, 1
      %s244 = smul.addr %s241, 2
      %s245 = sadd.s32 %s243, %s244
      %s246 = smul.addr %s245, 8
      %s247 = scalar_lea.vmem %s5, %s246
      %s248 = smul.u32 4, %s20
      %s249 = smul.u32 2, %s21
      %p250 = scmp.lt.s32.totalorder %s248, 7
      %s251 = scalar_select %p250, %s248, 7
      %p252 = scmp.lt.s32.totalorder %s249, 1
      %s253 = scalar_select %p252, %s249, 1
      %s254 = smul.addr %s251, 2
      %s255 = sadd.s32 %s253, %s254
      %s256 = smul.addr %s255, 8
      %s257 = scalar_lea.vmem %s0, %s256
      %s258 = smul.u32 4, %s20
      %s259 = smul.u32 2, %s21
      %s260 = smul.u32 4, %s20
      %s261 = smul.u32 2, %s21
      %p262 = scmp.lt.s32.totalorder %s260, 7
      %s263 = scalar_select %p262, %s260, 7
      %p264 = scmp.lt.s32.totalorder %s261, 1
      %s265 = scalar_select %p264, %s261, 1
      %s266 = smul.addr %s263, 2
      %s267 = sadd.s32 %s265, %s266
      %s268 = smul.addr %s267, 8
      %s269 = scalar_lea.vmem %s5, %s268
      %s270 = smul.u32 4, %s20
      %s271 = smul.u32 2, %s21
      %v272 = vld [vmem:[%s1] sm:$0xff]
      %v273 = vld [vmem:[%s1 + $0x8] sm:$0xff]
      %v274 = vld [vmem:[%s1 + $0x10] sm:$0xff]
      %v275 = vld [vmem:[%s1 + $0x18] sm:$0xff]
      %v276 = vld [vmem:[%s2] sm:$0xff]
      %v277 = vld [vmem:[%s2 + $0x8] sm:$0xff]
      %v278 = vld [vmem:[%s2 + $0x10] sm:$0xff]
      %v279 = vld [vmem:[%s2 + $0x18] sm:$0xff]
      %v280 = vld [vmem:[%s3] sm:$0xff]
      %v281 = vld [vmem:[%s4] sm:$0xff]
      %v282 = vld [vmem:[%s257] sm:$0xff]
      %v283 = vld [vmem:[%s257 + $0x8] sm:$0xff]
      %285 = vset.pattern.permute.xlu0 0
      %286 = vperm.xlu0 %285, %v276
      %v287 = vpop.permute.xlu0 %286
      %290 = vset.pattern.permute.xlu0 0
      %291 = vperm.xlu0 %290, %v277
      %v292 = vpop.permute.xlu0 %291
      %295 = vset.pattern.permute.xlu0 0
      %296 = vperm.xlu0 %295, %v278
      %v297 = vpop.permute.xlu0 %296
      %300 = vset.pattern.permute.xlu0 0
      %301 = vperm.xlu0 %300, %v279
      %v302 = vpop.permute.xlu0 %301
      %vm304 = vcmask 64512
      %v306 = vsel %vm304, %v272, 0
      %v309 = vsel %vm304, %v273, 0
      %v312 = vsel %vm304, %v274, 0
      %v315 = vsel %vm304, %v275, 0
      %317 = vmatprep.subr.mxu0 0.0
      %318 = vmatpush1.msra.mxu0 0.0
      %319 = vmatprep.subr.mxu0 0.0
      %320 = vmatpush1.msra.mxu0 0.0
      %321 = vmatprep.subr.mxu0 0.0
      %322 = vmatpush1.msra.mxu0 0.0
      %323 = vmatprep.subr.mxu0 0.0
      %324 = vmatpush1.msra.mxu0 0.0
      %325 = vmatprep.subr.mxu0 0.0
      %326 = vmatpush1.msra.mxu0 0.0
      %327 = vmatprep.subr.mxu0 0.0
      %328 = vmatpush1.msra.mxu0 0.0
      %329 = vmatprep.subr.mxu0 0.0
      %330 = vmatpush1.msra.mxu0 0.0
      %331 = vmatprep.subr.mxu0 0.0
      %332 = vmatpush1.msra.mxu0 0.0
      %333 = vmatprep.subr.mxu0 0.0
      %334 = vmatpush1.msra.mxu0 0.0
      %335 = vmatprep.subr.mxu0 0.0
      %336 = vmatpush1.msra.mxu0 0.0
      %337 = vmatprep.subr.mxu0 0.0
      %338 = vmatpush1.msra.mxu0 0.0
      %339 = vmatprep.subr.mxu0 0.0
      %340 = vmatpush1.msra.mxu0 0.0
      %341 = vmatprep.subr.mxu0 0.0
      %342 = vmatpush1.msra.mxu0 0.0
      %343 = vmatprep.subr.mxu0 0.0
      %344 = vmatpush1.msra.mxu0 0.0
      %345 = vmatprep.subr.mxu0 0.0
      %346 = vmatpush1.msra.mxu0 0.0
      %347 = vmatprep.subr.mxu0 %v283
      %348 = vmatpush1.msra.mxu0 %v282
      %349 = vmatprep.subr.mxu0 0.0
      %350 = vmatpush2.msra.mxu0 0.0
      %351 = vmatprep.subr.mxu0 0.0
      %352 = vmatpush2.msra.mxu0 0.0
      %353 = vmatprep.subr.mxu0 0.0
      %354 = vmatpush2.msra.mxu0 0.0
      %355 = vmatprep.subr.mxu0 0.0
      %356 = vmatpush2.msra.mxu0 0.0
      %357 = vmatprep.subr.mxu0 0.0
      %358 = vmatpush2.msra.mxu0 0.0
      %359 = vmatprep.subr.mxu0 0.0
      %360 = vmatpush2.msra.mxu0 0.0
      %361 = vmatprep.subr.mxu0 0.0
      %362 = vmatpush2.msra.mxu0 0.0
      %363 = vmatprep.subr.mxu0 0.0
      %364 = vmatpush2.msra.mxu0 0.0
      %365 = vmatprep.subr.mxu0 0.0
      %366 = vmatpush2.msra.mxu0 0.0
      %367 = vmatprep.subr.mxu0 0.0
      %368 = vmatpush2.msra.mxu0 0.0
      %369 = vmatprep.subr.mxu0 0.0
      %370 = vmatpush2.msra.mxu0 0.0
      %371 = vmatprep.subr.mxu0 0.0
      %372 = vmatpush2.msra.mxu0 0.0
      %373 = vmatprep.subr.mxu0 0.0
      %374 = vmatpush2.msra.mxu0 0.0
      %375 = vmatprep.subr.mxu0 0.0
      %376 = vmatpush2.msra.mxu0 0.0
      %377 = vmatprep.subr.mxu0 0.0
      %378 = vmatpush2.msra.mxu0 0.0
      %379 = vmatprep.subr.mxu0 0.0
      %380 = vmatpush2.msra.mxu0 0.0
      %381 = vmatprep.mubr.f32.mxu0 0.0
      %382 = vmatmul.mubr.f32.gmra.mxu0 %v306
      %v383 = vpop.f32.mrf.mxu0
      %v384 = vadd.f32 %v287, %v383
      %v385 = vpop.f32.mrf.mxu0
      %v386 = vadd.f32 %v287, %v385
      %387 = vmatprep.mubr.f32.mxu0 0.0
      %388 = vmatmul.mubr.f32.gmra.mxu0 %v309
      %v389 = vpop.f32.mrf.mxu0
      %v390 = vadd.f32 %v292, %v389
      %v391 = vpop.f32.mrf.mxu0
      %v392 = vadd.f32 %v292, %v391
      %393 = vmatprep.mubr.f32.mxu0 0.0
      %394 = vmatmul.mubr.f32.gmra.mxu0 %v312
      %v395 = vpop.f32.mrf.mxu0
      %v396 = vadd.f32 %v297, %v395
      %v397 = vpop.f32.mrf.mxu0
      %v398 = vadd.f32 %v297, %v397
      %399 = vmatprep.mubr.f32.mxu0 0.0
      %400 = vmatmul.mubr.f32.gmra.mxu0 %v315
      %v401 = vpop.f32.mrf.mxu0
      %v402 = vadd.f32 %v302, %v401
      %v403 = vpop.f32.mrf.mxu0
      %v404 = vadd.f32 %v302, %v403
      %405 = vdwg.mxu0
      %v406 = vmul.f32 %v384, 0.5
      %v407 = vmul.f32 %v386, 0.5
      %v408 = vmul.f32 %v390, 0.5
      %v409 = vmul.f32 %v392, 0.5
      %v410 = vmul.f32 %v396, 0.5
      %v411 = vmul.f32 %v398, 0.5
      %v412 = vmul.f32 %v402, 0.5
      %v413 = vmul.f32 %v404, 0.5
      %v414 = vmul.f32 %v384, 0.70710677
      %v415 = vmul.f32 %v386, 0.70710677
      %v416 = vmul.f32 %v390, 0.70710677
      %v417 = vmul.f32 %v392, 0.70710677
      %v418 = vmul.f32 %v396, 0.70710677
      %v419 = vmul.f32 %v398, 0.70710677
      %v420 = vmul.f32 %v402, 0.70710677
      %v421 = vmul.f32 %v404, 0.70710677
      %v422 = verf.f32.pop %v414
      %v423 = verf.f32.pop %v415
      %v424 = verf.f32.pop %v416
      %v425 = verf.f32.pop %v417
      %v426 = verf.f32.pop %v418
      %v427 = verf.f32.pop %v419
      %v428 = verf.f32.pop %v420
      %v429 = verf.f32.pop %v421
      %v430 = vadd.f32 %v422, 1.0
      %v431 = vadd.f32 %v423, 1.0
      %v432 = vadd.f32 %v424, 1.0
      %v433 = vadd.f32 %v425, 1.0
      %v434 = vadd.f32 %v426, 1.0
      %v435 = vadd.f32 %v427, 1.0
      %v436 = vadd.f32 %v428, 1.0
      %v437 = vadd.f32 %v429, 1.0
      %v438 = vmul.f32 %v406, %v430
      %v439 = vmul.f32 %v407, %v431
      %v440 = vmul.f32 %v408, %v432
      %v441 = vmul.f32 %v409, %v433
      %v442 = vmul.f32 %v410, %v434
      %v443 = vmul.f32 %v411, %v435
      %v444 = vmul.f32 %v412, %v436
      %v445 = vmul.f32 %v413, %v437
      %447 = vset.pattern.permute.xlu0 0
      %448 = vperm.xlu0 %447, %v281
      %v449 = vpop.permute.xlu0 %448
      %vm451 = vcmask 261120
      %v453 = vsel %vm451, %v280, 0
      %455 = vmatprep.subr.mxu0 0.0
      %456 = vmatpush1.msra.mxu0 0.0
      %457 = vmatprep.subr.mxu0 0.0
      %458 = vmatpush1.msra.mxu0 0.0
      %459 = vmatprep.subr.mxu0 0.0
      %460 = vmatpush1.msra.mxu0 0.0
      %461 = vmatprep.subr.mxu0 0.0
      %462 = vmatpush1.msra.mxu0 0.0
      %463 = vmatprep.subr.mxu0 0.0
      %464 = vmatpush1.msra.mxu0 0.0
      %465 = vmatprep.subr.mxu0 0.0
      %466 = vmatpush1.msra.mxu0 0.0
      %467 = vmatprep.subr.mxu0 0.0
      %468 = vmatpush1.msra.mxu0 0.0
      %469 = vmatprep.subr.mxu0 0.0
      %470 = vmatpush1.msra.mxu0 0.0
      %471 = vmatprep.subr.mxu0 0.0
      %472 = vmatpush1.msra.mxu0 0.0
      %473 = vmatprep.subr.mxu0 0.0
      %474 = vmatpush1.msra.mxu0 0.0
      %475 = vmatprep.subr.mxu0 0.0
      %476 = vmatpush1.msra.mxu0 0.0
      %477 = vmatprep.subr.mxu0 0.0
      %478 = vmatpush1.msra.mxu0 0.0
      %479 = vmatprep.subr.mxu0 %v445
      %480 = vmatpush1.msra.mxu0 %v444
      %481 = vmatprep.subr.mxu0 %v443
      %482 = vmatpush1.msra.mxu0 %v442
      %483 = vmatprep.subr.mxu0 %v441
      %484 = vmatpush1.msra.mxu0 %v440
      %485 = vmatprep.subr.mxu0 %v439
      %486 = vmatpush1.msra.mxu0 %v438
      %487 = vmatprep.subr.mxu0 0.0
      %488 = vmatpush2.msra.mxu0 0.0
      %489 = vmatprep.subr.mxu0 0.0
      %490 = vmatpush2.msra.mxu0 0.0
      %491 = vmatprep.subr.mxu0 0.0
      %492 = vmatpush2.msra.mxu0 0.0
      %493 = vmatprep.subr.mxu0 0.0
      %494 = vmatpush2.msra.mxu0 0.0
      %495 = vmatprep.subr.mxu0 0.0
      %496 = vmatpush2.msra.mxu0 0.0
      %497 = vmatprep.subr.mxu0 0.0
      %498 = vmatpush2.msra.mxu0 0.0
      %499 = vmatprep.subr.mxu0 0.0
      %500 = vmatpush2.msra.mxu0 0.0
      %501 = vmatprep.subr.mxu0 0.0
      %502 = vmatpush2.msra.mxu0 0.0
      %503 = vmatprep.subr.mxu0 0.0
      %504 = vmatpush2.msra.mxu0 0.0
      %505 = vmatprep.subr.mxu0 0.0
      %506 = vmatpush2.msra.mxu0 0.0
      %507 = vmatprep.subr.mxu0 0.0
      %508 = vmatpush2.msra.mxu0 0.0
      %509 = vmatprep.subr.mxu0 0.0
      %510 = vmatpush2.msra.mxu0 0.0
      %511 = vmatprep.subr.mxu0 0.0
      %512 = vmatpush2.msra.mxu0 0.0
      %513 = vmatprep.subr.mxu0 0.0
      %514 = vmatpush2.msra.mxu0 0.0
      %515 = vmatprep.subr.mxu0 0.0
      %516 = vmatpush2.msra.mxu0 0.0
      %517 = vmatprep.subr.mxu0 0.0
      %518 = vmatpush2.msra.mxu0 0.0
      %519 = vmatprep.mubr.f32.mxu0 0.0
      %520 = vmatmul.mubr.f32.gmra.mxu0 %v453
      %v521 = vpop.f32.mrf.mxu0
      %v522 = vadd.f32 %v449, %v521
      %v523 = vpop.f32.mrf.mxu0
      %v524 = vadd.f32 %v449, %v523
      %525 = vdwg.mxu0
      %526 = vst [vmem:[%s269] sm:$0xff] %v522
      %527 = vst [vmem:[%s269 + $0x8] sm:$0xff] %v524
      %s528 = scalar_lea.vmem %s257, 16
      %v529 = vld [vmem:[%s528] sm:$0xff]
      %v530 = vld [vmem:[%s528 + $0x8] sm:$0xff]
      %531 = vmatprep.subr.mxu0 0.0
      %532 = vmatpush1.msra.mxu0 0.0
      %533 = vmatprep.subr.mxu0 0.0
      %534 = vmatpush1.msra.mxu0 0.0
      %535 = vmatprep.subr.mxu0 0.0
      %536 = vmatpush1.msra.mxu0 0.0
      %537 = vmatprep.subr.mxu0 0.0
      %538 = vmatpush1.msra.mxu0 0.0
      %539 = vmatprep.subr.mxu0 0.0
      %540 = vmatpush1.msra.mxu0 0.0
      %541 = vmatprep.subr.mxu0 0.0
      %542 = vmatpush1.msra.mxu0 0.0
      %543 = vmatprep.subr.mxu0 0.0
      %544 = vmatpush1.msra.mxu0 0.0
      %545 = vmatprep.subr.mxu0 0.0
      %546 = vmatpush1.msra.mxu0 0.0
      %547 = vmatprep.subr.mxu0 0.0
      %548 = vmatpush1.msra.mxu0 0.0
      %549 = vmatprep.subr.mxu0 0.0
      %550 = vmatpush1.msra.mxu0 0.0
      %551 = vmatprep.subr.mxu0 0.0
      %552 = vmatpush1.msra.mxu0 0.0
      %553 = vmatprep.subr.mxu0 0.0
      %554 = vmatpush1.msra.mxu0 0.0
      %555 = vmatprep.subr.mxu0 0.0
      %556 = vmatpush1.msra.mxu0 0.0
      %557 = vmatprep.subr.mxu0 0.0
      %558 = vmatpush1.msra.mxu0 0.0
      %559 = vmatprep.subr.mxu0 0.0
      %560 = vmatpush1.msra.mxu0 0.0
      %561 = vmatprep.subr.mxu0 %v530
      %562 = vmatpush1.msra.mxu0 %v529
      %563 = vmatprep.subr.mxu0 0.0
      %564 = vmatpush2.msra.mxu0 0.0
      %565 = vmatprep.subr.mxu0 0.0
      %566 = vmatpush2.msra.mxu0 0.0
      %567 = vmatprep.subr.mxu0 0.0
      %568 = vmatpush2.msra.mxu0 0.0
      %569 = vmatprep.subr.mxu0 0.0
      %570 = vmatpush2.msra.mxu0 0.0
      %571 = vmatprep.subr.mxu0 0.0
      %572 = vmatpush2.msra.mxu0 0.0
      %573 = vmatprep.subr.mxu0 0.0
      %574 = vmatpush2.msra.mxu0 0.0
      %575 = vmatprep.subr.mxu0 0.0
      %576 = vmatpush2.msra.mxu0 0.0
      %577 = vmatprep.subr.mxu0 0.0
      %578 = vmatpush2.msra.mxu0 0.0
      %579 = vmatprep.subr.mxu0 0.0
      %580 = vmatpush2.msra.mxu0 0.0
      %581 = vmatprep.subr.mxu0 0.0
      %582 = vmatpush2.msra.mxu0 0.0
      %583 = vmatprep.subr.mxu0 0.0
      %584 = vmatpush2.msra.mxu0 0.0
      %585 = vmatprep.subr.mxu0 0.0
      %586 = vmatpush2.msra.mxu0 0.0
      %587 = vmatprep.subr.mxu0 0.0
      %588 = vmatpush2.msra.mxu0 0.0
      %589 = vmatprep.subr.mxu0 0.0
      %590 = vmatpush2.msra.mxu0 0.0
      %591 = vmatprep.subr.mxu0 0.0
      %592 = vmatpush2.msra.mxu0 0.0
      %593 = vmatprep.subr.mxu0 0.0
      %594 = vmatpush2.msra.mxu0 0.0
      %595 = vmatprep.mubr.f32.mxu0 0.0
      %596 = vmatmul.mubr.f32.gmra.mxu0 %v306
      %v597 = vpop.f32.mrf.mxu0
      %v598 = vadd.f32 %v287, %v597
      %v599 = vpop.f32.mrf.mxu0
      %v600 = vadd.f32 %v287, %v599
      %601 = vmatprep.mubr.f32.mxu0 0.0
      %602 = vmatmul.mubr.f32.gmra.mxu0 %v309
      %v603 = vpop.f32.mrf.mxu0
      %v604 = vadd.f32 %v292, %v603
      %v605 = vpop.f32.mrf.mxu0
      %v606 = vadd.f32 %v292, %v605
      %607 = vmatprep.mubr.f32.mxu0 0.0
      %608 = vmatmul.mubr.f32.gmra.mxu0 %v312
      %v609 = vpop.f32.mrf.mxu0
      %v610 = vadd.f32 %v297, %v609
      %v611 = vpop.f32.mrf.mxu0
      %v612 = vadd.f32 %v297, %v611
      %613 = vmatprep.mubr.f32.mxu0 0.0
      %614 = vmatmul.mubr.f32.gmra.mxu0 %v315
      %v615 = vpop.f32.mrf.mxu0
      %v616 = vadd.f32 %v302, %v615
      %v617 = vpop.f32.mrf.mxu0
      %v618 = vadd.f32 %v302, %v617
      %619 = vdwg.mxu0
      %v620 = vmul.f32 %v598, 0.5
      %v621 = vmul.f32 %v600, 0.5
      %v622 = vmul.f32 %v604, 0.5
      %v623 = vmul.f32 %v606, 0.5
      %v624 = vmul.f32 %v610, 0.5
      %v625 = vmul.f32 %v612, 0.5
      %v626 = vmul.f32 %v616, 0.5
      %v627 = vmul.f32 %v618, 0.5
      %v628 = vmul.f32 %v598, 0.70710677
      %v629 = vmul.f32 %v600, 0.70710677
      %v630 = vmul.f32 %v604, 0.70710677
      %v631 = vmul.f32 %v606, 0.70710677
      %v632 = vmul.f32 %v610, 0.70710677
      %v633 = vmul.f32 %v612, 0.70710677
      %v634 = vmul.f32 %v616, 0.70710677
      %v635 = vmul.f32 %v618, 0.70710677
      %v636 = verf.f32.pop %v628
      %v637 = verf.f32.pop %v629
      %v638 = verf.f32.pop %v630
      %v639 = verf.f32.pop %v631
      %v640 = verf.f32.pop %v632
      %v641 = verf.f32.pop %v633
      %v642 = verf.f32.pop %v634
      %v643 = verf.f32.pop %v635
      %v644 = vadd.f32 %v636, 1.0
      %v645 = vadd.f32 %v637, 1.0
      %v646 = vadd.f32 %v638, 1.0
      %v647 = vadd.f32 %v639, 1.0
      %v648 = vadd.f32 %v640, 1.0
      %v649 = vadd.f32 %v641, 1.0
      %v650 = vadd.f32 %v642, 1.0
      %v651 = vadd.f32 %v643, 1.0
      %v652 = vmul.f32 %v620, %v644
      %v653 = vmul.f32 %v621, %v645
      %v654 = vmul.f32 %v622, %v646
      %v655 = vmul.f32 %v623, %v647
      %v656 = vmul.f32 %v624, %v648
      %v657 = vmul.f32 %v625, %v649
      %v658 = vmul.f32 %v626, %v650
      %v659 = vmul.f32 %v627, %v651
      %660 = vmatprep.subr.mxu0 0.0
      %661 = vmatpush1.msra.mxu0 0.0
      %662 = vmatprep.subr.mxu0 0.0
      %663 = vmatpush1.msra.mxu0 0.0
      %664 = vmatprep.subr.mxu0 0.0
      %665 = vmatpush1.msra.mxu0 0.0
      %666 = vmatprep.subr.mxu0 0.0
      %667 = vmatpush1.msra.mxu0 0.0
      %668 = vmatprep.subr.mxu0 0.0
      %669 = vmatpush1.msra.mxu0 0.0
      %670 = vmatprep.subr.mxu0 0.0
      %671 = vmatpush1.msra.mxu0 0.0
      %672 = vmatprep.subr.mxu0 0.0
      %673 = vmatpush1.msra.mxu0 0.0
      %674 = vmatprep.subr.mxu0 0.0
      %675 = vmatpush1.msra.mxu0 0.0
      %676 = vmatprep.subr.mxu0 0.0
      %677 = vmatpush1.msra.mxu0 0.0
      %678 = vmatprep.subr.mxu0 0.0
      %679 = vmatpush1.msra.mxu0 0.0
      %680 = vmatprep.subr.mxu0 0.0
      %681 = vmatpush1.msra.mxu0 0.0
      %682 = vmatprep.subr.mxu0 0.0
      %683 = vmatpush1.msra.mxu0 0.0
      %684 = vmatprep.subr.mxu0 %v659
      %685 = vmatpush1.msra.mxu0 %v658
      %686 = vmatprep.subr.mxu0 %v657
      %687 = vmatpush1.msra.mxu0 %v656
      %688 = vmatprep.subr.mxu0 %v655
      %689 = vmatpush1.msra.mxu0 %v654
      %690 = vmatprep.subr.mxu0 %v653
      %691 = vmatpush1.msra.mxu0 %v652
      %692 = vmatprep.subr.mxu0 0.0
      %693 = vmatpush2.msra.mxu0 0.0
      %694 = vmatprep.subr.mxu0 0.0
      %695 = vmatpush2.msra.mxu0 0.0
      %696 = vmatprep.subr.mxu0 0.0
      %697 = vmatpush2.msra.mxu0 0.0
      %698 = vmatprep.subr.mxu0 0.0
      %699 = vmatpush2.msra.mxu0 0.0
      %700 = vmatprep.subr.mxu0 0.0
      %701 = vmatpush2.msra.mxu0 0.0
      %702 = vmatprep.subr.mxu0 0.0
      %703 = vmatpush2.msra.mxu0 0.0
      %704 = vmatprep.subr.mxu0 0.0
      %705 = vmatpush2.msra.mxu0 0.0
      %706 = vmatprep.subr.mxu0 0.0
      %707 = vmatpush2.msra.mxu0 0.0
      %708 = vmatprep.subr.mxu0 0.0
      %709 = vmatpush2.msra.mxu0 0.0
      %710 = vmatprep.subr.mxu0 0.0
      %711 = vmatpush2.msra.mxu0 0.0
      %712 = vmatprep.subr.mxu0 0.0
      %713 = vmatpush2.msra.mxu0 0.0
      %714 = vmatprep.subr.mxu0 0.0
      %715 = vmatpush2.msra.mxu0 0.0
      %716 = vmatprep.subr.mxu0 0.0
      %717 = vmatpush2.msra.mxu0 0.0
      %718 = vmatprep.subr.mxu0 0.0
      %719 = vmatpush2.msra.mxu0 0.0
      %720 = vmatprep.subr.mxu0 0.0
      %721 = vmatpush2.msra.mxu0 0.0
      %722 = vmatprep.subr.mxu0 0.0
      %723 = vmatpush2.msra.mxu0 0.0
      %724 = vmatprep.mubr.f32.mxu0 0.0
      %725 = vmatmul.mubr.f32.gmra.mxu0 %v453
      %v726 = vpop.f32.mrf.mxu0
      %v727 = vadd.f32 %v449, %v726
      %v728 = vpop.f32.mrf.mxu0
      %v729 = vadd.f32 %v449, %v728
      %730 = vdwg.mxu0
      %s731 = scalar_lea.vmem %s269, 16
      %732 = vst [vmem:[%s731] sm:$0xff] %v727
      %733 = vst [vmem:[%s731 + $0x8] sm:$0xff] %v729
      %s734 = scalar_lea.vmem %s257, 32
      %v735 = vld [vmem:[%s734] sm:$0xff]
      %v736 = vld [vmem:[%s734 + $0x8] sm:$0xff]
      %737 = vmatprep.subr.mxu0 0.0
      %738 = vmatpush1.msra.mxu0 0.0
      %739 = vmatprep.subr.mxu0 0.0
      %740 = vmatpush1.msra.mxu0 0.0
      %741 = vmatprep.subr.mxu0 0.0
      %742 = vmatpush1.msra.mxu0 0.0
      %743 = vmatprep.subr.mxu0 0.0
      %744 = vmatpush1.msra.mxu0 0.0
      %745 = vmatprep.subr.mxu0 0.0
      %746 = vmatpush1.msra.mxu0 0.0
      %747 = vmatprep.subr.mxu0 0.0
      %748 = vmatpush1.msra.mxu0 0.0
      %749 = vmatprep.subr.mxu0 0.0
      %750 = vmatpush1.msra.mxu0 0.0
      %751 = vmatprep.subr.mxu0 0.0
      %752 = vmatpush1.msra.mxu0 0.0
      %753 = vmatprep.subr.mxu0 0.0
      %754 = vmatpush1.msra.mxu0 0.0
      %755 = vmatprep.subr.mxu0 0.0
      %756 = vmatpush1.msra.mxu0 0.0
      %757 = vmatprep.subr.mxu0 0.0
      %758 = vmatpush1.msra.mxu0 0.0
      %759 = vmatprep.subr.mxu0 0.0
      %760 = vmatpush1.msra.mxu0 0.0
      %761 = vmatprep.subr.mxu0 0.0
      %762 = vmatpush1.msra.mxu0 0.0
      %763 = vmatprep.subr.mxu0 0.0
      %764 = vmatpush1.msra.mxu0 0.0
      %765 = vmatprep.subr.mxu0 0.0
      %766 = vmatpush1.msra.mxu0 0.0
      %767 = vmatprep.subr.mxu0 %v736
      %768 = vmatpush1.msra.mxu0 %v735
      %769 = vmatprep.subr.mxu0 0.0
      %770 = vmatpush2.msra.mxu0 0.0
      %771 = vmatprep.subr.mxu0 0.0
      %772 = vmatpush2.msra.mxu0 0.0
      %773 = vmatprep.subr.mxu0 0.0
      %774 = vmatpush2.msra.mxu0 0.0
      %775 = vmatprep.subr.mxu0 0.0
      %776 = vmatpush2.msra.mxu0 0.0
      %777 = vmatprep.subr.mxu0 0.0
      %778 = vmatpush2.msra.mxu0 0.0
      %779 = vmatprep.subr.mxu0 0.0
      %780 = vmatpush2.msra.mxu0 0.0
      %781 = vmatprep.subr.mxu0 0.0
      %782 = vmatpush2.msra.mxu0 0.0
      %783 = vmatprep.subr.mxu0 0.0
      %784 = vmatpush2.msra.mxu0 0.0
      %785 = vmatprep.subr.mxu0 0.0
      %786 = vmatpush2.msra.mxu0 0.0
      %787 = vmatprep.subr.mxu0 0.0
      %788 = vmatpush2.msra.mxu0 0.0
      %789 = vmatprep.subr.mxu0 0.0
      %790 = vmatpush2.msra.mxu0 0.0
      %791 = vmatprep.subr.mxu0 0.0
      %792 = vmatpush2.msra.mxu0 0.0
      %793 = vmatprep.subr.mxu0 0.0
      %794 = vmatpush2.msra.mxu0 0.0
      %795 = vmatprep.subr.mxu0 0.0
      %796 = vmatpush2.msra.mxu0 0.0
      %797 = vmatprep.subr.mxu0 0.0
      %798 = vmatpush2.msra.mxu0 0.0
      %799 = vmatprep.subr.mxu0 0.0
      %800 = vmatpush2.msra.mxu0 0.0
      %801 = vmatprep.mubr.f32.mxu0 0.0
      %802 = vmatmul.mubr.f32.gmra.mxu0 %v306
      %v803 = vpop.f32.mrf.mxu0
      %v804 = vadd.f32 %v287, %v803
      %v805 = vpop.f32.mrf.mxu0
      %v806 = vadd.f32 %v287, %v805
      %807 = vmatprep.mubr.f32.mxu0 0.0
      %808 = vmatmul.mubr.f32.gmra.mxu0 %v309
      %v809 = vpop.f32.mrf.mxu0
      %v810 = vadd.f32 %v292, %v809
      %v811 = vpop.f32.mrf.mxu0
      %v812 = vadd.f32 %v292, %v811
      %813 = vmatprep.mubr.f32.mxu0 0.0
      %814 = vmatmul.mubr.f32.gmra.mxu0 %v312
      %v815 = vpop.f32.mrf.mxu0
      %v816 = vadd.f32 %v297, %v815
      %v817 = vpop.f32.mrf.mxu0
      %v818 = vadd.f32 %v297, %v817
      %819 = vmatprep.mubr.f32.mxu0 0.0
      %820 = vmatmul.mubr.f32.gmra.mxu0 %v315
      %v821 = vpop.f32.mrf.mxu0
      %v822 = vadd.f32 %v302, %v821
      %v823 = vpop.f32.mrf.mxu0
      %v824 = vadd.f32 %v302, %v823
      %825 = vdwg.mxu0
      %v826 = vmul.f32 %v804, 0.5
      %v827 = vmul.f32 %v806, 0.5
      %v828 = vmul.f32 %v810, 0.5
      %v829 = vmul.f32 %v812, 0.5
      %v830 = vmul.f32 %v816, 0.5
      %v831 = vmul.f32 %v818, 0.5
      %v832 = vmul.f32 %v822, 0.5
      %v833 = vmul.f32 %v824, 0.5
      %v834 = vmul.f32 %v804, 0.70710677
      %v835 = vmul.f32 %v806, 0.70710677
      %v836 = vmul.f32 %v810, 0.70710677
      %v837 = vmul.f32 %v812, 0.70710677
      %v838 = vmul.f32 %v816, 0.70710677
      %v839 = vmul.f32 %v818, 0.70710677
      %v840 = vmul.f32 %v822, 0.70710677
      %v841 = vmul.f32 %v824, 0.70710677
      %v842 = verf.f32.pop %v834
      %v843 = verf.f32.pop %v835
      %v844 = verf.f32.pop %v836
      %v845 = verf.f32.pop %v837
      %v846 = verf.f32.pop %v838
      %v847 = verf.f32.pop %v839
      %v848 = verf.f32.pop %v840
      %v849 = verf.f32.pop %v841
      %v850 = vadd.f32 %v842, 1.0
      %v851 = vadd.f32 %v843, 1.0
      %v852 = vadd.f32 %v844, 1.0
      %v853 = vadd.f32 %v845, 1.0
      %v854 = vadd.f32 %v846, 1.0
      %v855 = vadd.f32 %v847, 1.0
      %v856 = vadd.f32 %v848, 1.0
      %v857 = vadd.f32 %v849, 1.0
      %v858 = vmul.f32 %v826, %v850
      %v859 = vmul.f32 %v827, %v851
      %v860 = vmul.f32 %v828, %v852
      %v861 = vmul.f32 %v829, %v853
      %v862 = vmul.f32 %v830, %v854
      %v863 = vmul.f32 %v831, %v855
      %v864 = vmul.f32 %v832, %v856
      %v865 = vmul.f32 %v833, %v857
      %866 = vmatprep.subr.mxu0 0.0
      %867 = vmatpush1.msra.mxu0 0.0
      %868 = vmatprep.subr.mxu0 0.0
      %869 = vmatpush1.msra.mxu0 0.0
      %870 = vmatprep.subr.mxu0 0.0
      %871 = vmatpush1.msra.mxu0 0.0
      %872 = vmatprep.subr.mxu0 0.0
      %873 = vmatpush1.msra.mxu0 0.0
      %874 = vmatprep.subr.mxu0 0.0
      %875 = vmatpush1.msra.mxu0 0.0
      %876 = vmatprep.subr.mxu0 0.0
      %877 = vmatpush1.msra.mxu0 0.0
      %878 = vmatprep.subr.mxu0 0.0
      %879 = vmatpush1.msra.mxu0 0.0
      %880 = vmatprep.subr.mxu0 0.0
      %881 = vmatpush1.msra.mxu0 0.0
      %882 = vmatprep.subr.mxu0 0.0
      %883 = vmatpush1.msra.mxu0 0.0
      %884 = vmatprep.subr.mxu0 0.0
      %885 = vmatpush1.msra.mxu0 0.0
      %886 = vmatprep.subr.mxu0 0.0
      %887 = vmatpush1.msra.mxu0 0.0
      %888 = vmatprep.subr.mxu0 0.0
      %889 = vmatpush1.msra.mxu0 0.0
      %890 = vmatprep.subr.mxu0 %v865
      %891 = vmatpush1.msra.mxu0 %v864
      %892 = vmatprep.subr.mxu0 %v863
      %893 = vmatpush1.msra.mxu0 %v862
      %894 = vmatprep.subr.mxu0 %v861
      %895 = vmatpush1.msra.mxu0 %v860
      %896 = vmatprep.subr.mxu0 %v859
      %897 = vmatpush1.msra.mxu0 %v858
      %898 = vmatprep.subr.mxu0 0.0
      %899 = vmatpush2.msra.mxu0 0.0
      %900 = vmatprep.subr.mxu0 0.0
      %901 = vmatpush2.msra.mxu0 0.0
      %902 = vmatprep.subr.mxu0 0.0
      %903 = vmatpush2.msra.mxu0 0.0
      %904 = vmatprep.subr.mxu0 0.0
      %905 = vmatpush2.msra.mxu0 0.0
      %906 = vmatprep.subr.mxu0 0.0
      %907 = vmatpush2.msra.mxu0 0.0
      %908 = vmatprep.subr.mxu0 0.0
      %909 = vmatpush2.msra.mxu0 0.0
      %910 = vmatprep.subr.mxu0 0.0
      %911 = vmatpush2.msra.mxu0 0.0
      %912 = vmatprep.subr.mxu0 0.0
      %913 = vmatpush2.msra.mxu0 0.0
      %914 = vmatprep.subr.mxu0 0.0
      %915 = vmatpush2.msra.mxu0 0.0
      %916 = vmatprep.subr.mxu0 0.0
      %917 = vmatpush2.msra.mxu0 0.0
      %918 = vmatprep.subr.mxu0 0.0
      %919 = vmatpush2.msra.mxu0 0.0
      %920 = vmatprep.subr.mxu0 0.0
      %921 = vmatpush2.msra.mxu0 0.0
      %922 = vmatprep.subr.mxu0 0.0
      %923 = vmatpush2.msra.mxu0 0.0
      %924 = vmatprep.subr.mxu0 0.0
      %925 = vmatpush2.msra.mxu0 0.0
      %926 = vmatprep.subr.mxu0 0.0
      %927 = vmatpush2.msra.mxu0 0.0
      %928 = vmatprep.subr.mxu0 0.0
      %929 = vmatpush2.msra.mxu0 0.0
      %930 = vmatprep.mubr.f32.mxu0 0.0
      %931 = vmatmul.mubr.f32.gmra.mxu0 %v453
      %v932 = vpop.f32.mrf.mxu0
      %v933 = vadd.f32 %v449, %v932
      %v934 = vpop.f32.mrf.mxu0
      %v935 = vadd.f32 %v449, %v934
      %936 = vdwg.mxu0
      %s937 = scalar_lea.vmem %s269, 32
      %938 = vst [vmem:[%s937] sm:$0xff] %v933
      %939 = vst [vmem:[%s937 + $0x8] sm:$0xff] %v935
      %s940 = scalar_lea.vmem %s257, 48
      %v941 = vld [vmem:[%s940] sm:$0xff]
      %v942 = vld [vmem:[%s940 + $0x8] sm:$0xff]
      %943 = vmatprep.subr.mxu0 0.0
      %944 = vmatpush1.msra.mxu0 0.0
      %945 = vmatprep.subr.mxu0 0.0
      %946 = vmatpush1.msra.mxu0 0.0
      %947 = vmatprep.subr.mxu0 0.0
      %948 = vmatpush1.msra.mxu0 0.0
      %949 = vmatprep.subr.mxu0 0.0
      %950 = vmatpush1.msra.mxu0 0.0
      %951 = vmatprep.subr.mxu0 0.0
      %952 = vmatpush1.msra.mxu0 0.0
      %953 = vmatprep.subr.mxu0 0.0
      %954 = vmatpush1.msra.mxu0 0.0
      %955 = vmatprep.subr.mxu0 0.0
      %956 = vmatpush1.msra.mxu0 0.0
      %957 = vmatprep.subr.mxu0 0.0
      %958 = vmatpush1.msra.mxu0 0.0
      %959 = vmatprep.subr.mxu0 0.0
      %960 = vmatpush1.msra.mxu0 0.0
      %961 = vmatprep.subr.mxu0 0.0
      %962 = vmatpush1.msra.mxu0 0.0
      %963 = vmatprep.subr.mxu0 0.0
      %964 = vmatpush1.msra.mxu0 0.0
      %965 = vmatprep.subr.mxu0 0.0
      %966 = vmatpush1.msra.mxu0 0.0
      %967 = vmatprep.subr.mxu0 0.0
      %968 = vmatpush1.msra.mxu0 0.0
      %969 = vmatprep.subr.mxu0 0.0
      %970 = vmatpush1.msra.mxu0 0.0
      %971 = vmatprep.subr.mxu0 0.0
      %972 = vmatpush1.msra.mxu0 0.0
      %973 = vmatprep.subr.mxu0 %v942
      %974 = vmatpush1.msra.mxu0 %v941
      %975 = vmatprep.subr.mxu0 0.0
      %976 = vmatpush2.msra.mxu0 0.0
      %977 = vmatprep.subr.mxu0 0.0
      %978 = vmatpush2.msra.mxu0 0.0
      %979 = vmatprep.subr.mxu0 0.0
      %980 = vmatpush2.msra.mxu0 0.0
      %981 = vmatprep.subr.mxu0 0.0
      %982 = vmatpush2.msra.mxu0 0.0
      %983 = vmatprep.subr.mxu0 0.0
      %984 = vmatpush2.msra.mxu0 0.0
      %985 = vmatprep.subr.mxu0 0.0
      %986 = vmatpush2.msra.mxu0 0.0
      %987 = vmatprep.subr.mxu0 0.0
      %988 = vmatpush2.msra.mxu0 0.0
      %989 = vmatprep.subr.mxu0 0.0
      %990 = vmatpush2.msra.mxu0 0.0
      %991 = vmatprep.subr.mxu0 0.0
      %992 = vmatpush2.msra.mxu0 0.0
      %993 = vmatprep.subr.mxu0 0.0
      %994 = vmatpush2.msra.mxu0 0.0
      %995 = vmatprep.subr.mxu0 0.0
      %996 = vmatpush2.msra.mxu0 0.0
      %997 = vmatprep.subr.mxu0 0.0
      %998 = vmatpush2.msra.mxu0 0.0
      %999 = vmatprep.subr.mxu0 0.0
      %1000 = vmatpush2.msra.mxu0 0.0
      %1001 = vmatprep.subr.mxu0 0.0
      %1002 = vmatpush2.msra.mxu0 0.0
      %1003 = vmatprep.subr.mxu0 0.0
      %1004 = vmatpush2.msra.mxu0 0.0
      %1005 = vmatprep.subr.mxu0 0.0
      %1006 = vmatpush2.msra.mxu0 0.0
      %1007 = vmatprep.mubr.f32.mxu0 0.0
      %1008 = vmatmul.mubr.f32.gmra.mxu0 %v306
      %v1009 = vpop.f32.mrf.mxu0
      %v1010 = vadd.f32 %v287, %v1009
      %v1011 = vpop.f32.mrf.mxu0
      %v1012 = vadd.f32 %v287, %v1011
      %1013 = vmatprep.mubr.f32.mxu0 0.0
      %1014 = vmatmul.mubr.f32.gmra.mxu0 %v309
      %v1015 = vpop.f32.mrf.mxu0
      %v1016 = vadd.f32 %v292, %v1015
      %v1017 = vpop.f32.mrf.mxu0
      %v1018 = vadd.f32 %v292, %v1017
      %1019 = vmatprep.mubr.f32.mxu0 0.0
      %1020 = vmatmul.mubr.f32.gmra.mxu0 %v312
      %v1021 = vpop.f32.mrf.mxu0
      %v1022 = vadd.f32 %v297, %v1021
      %v1023 = vpop.f32.mrf.mxu0
      %v1024 = vadd.f32 %v297, %v1023
      %1025 = vmatprep.mubr.f32.mxu0 0.0
      %1026 = vmatmul.mubr.f32.gmra.mxu0 %v315
      %v1027 = vpop.f32.mrf.mxu0
      %v1028 = vadd.f32 %v302, %v1027
      %v1029 = vpop.f32.mrf.mxu0
      %v1030 = vadd.f32 %v302, %v1029
      %1031 = vdwg.mxu0
      %v1032 = vmul.f32 %v1010, 0.5
      %v1033 = vmul.f32 %v1012, 0.5
      %v1034 = vmul.f32 %v1016, 0.5
      %v1035 = vmul.f32 %v1018, 0.5
      %v1036 = vmul.f32 %v1022, 0.5
      %v1037 = vmul.f32 %v1024, 0.5
      %v1038 = vmul.f32 %v1028, 0.5
      %v1039 = vmul.f32 %v1030, 0.5
      %v1040 = vmul.f32 %v1010, 0.70710677
      %v1041 = vmul.f32 %v1012, 0.70710677
      %v1042 = vmul.f32 %v1016, 0.70710677
      %v1043 = vmul.f32 %v1018, 0.70710677
      %v1044 = vmul.f32 %v1022, 0.70710677
      %v1045 = vmul.f32 %v1024, 0.70710677
      %v1046 = vmul.f32 %v1028, 0.70710677
      %v1047 = vmul.f32 %v1030, 0.70710677
      %v1048 = verf.f32.pop %v1040
      %v1049 = verf.f32.pop %v1041
      %v1050 = verf.f32.pop %v1042
      %v1051 = verf.f32.pop %v1043
      %v1052 = verf.f32.pop %v1044
      %v1053 = verf.f32.pop %v1045
      %v1054 = verf.f32.pop %v1046
      %v1055 = verf.f32.pop %v1047
      %v1056 = vadd.f32 %v1048, 1.0
      %v1057 = vadd.f32 %v1049, 1.0
      %v1058 = vadd.f32 %v1050, 1.0
      %v1059 = vadd.f32 %v1051, 1.0
      %v1060 = vadd.f32 %v1052, 1.0
      %v1061 = vadd.f32 %v1053, 1.0
      %v1062 = vadd.f32 %v1054, 1.0
      %v1063 = vadd.f32 %v1055, 1.0
      %v1064 = vmul.f32 %v1032, %v1056
      %v1065 = vmul.f32 %v1033, %v1057
      %v1066 = vmul.f32 %v1034, %v1058
      %v1067 = vmul.f32 %v1035, %v1059
      %v1068 = vmul.f32 %v1036, %v1060
      %v1069 = vmul.f32 %v1037, %v1061
      %v1070 = vmul.f32 %v1038, %v1062
      %v1071 = vmul.f32 %v1039, %v1063
      %1072 = vmatprep.subr.mxu0 0.0
      %1073 = vmatpush1.msra.mxu0 0.0
      %1074 = vmatprep.subr.mxu0 0.0
      %1075 = vmatpush1.msra.mxu0 0.0
      %1076 = vmatprep.subr.mxu0 0.0
      %1077 = vmatpush1.msra.mxu0 0.0
      %1078 = vmatprep.subr.mxu0 0.0
      %1079 = vmatpush1.msra.mxu0 0.0
      %1080 = vmatprep.subr.mxu0 0.0
      %1081 = vmatpush1.msra.mxu0 0.0
      %1082 = vmatprep.subr.mxu0 0.0
      %1083 = vmatpush1.msra.mxu0 0.0
      %1084 = vmatprep.subr.mxu0 0.0
      %1085 = vmatpush1.msra.mxu0 0.0
      %1086 = vmatprep.subr.mxu0 0.0
      %1087 = vmatpush1.msra.mxu0 0.0
      %1088 = vmatprep.subr.mxu0 0.0
      %1089 = vmatpush1.msra.mxu0 0.0
      %1090 = vmatprep.subr.mxu0 0.0
      %1091 = vmatpush1.msra.mxu0 0.0
      %1092 = vmatprep.subr.mxu0 0.0
      %1093 = vmatpush1.msra.mxu0 0.0
      %1094 = vmatprep.subr.mxu0 0.0
      %1095 = vmatpush1.msra.mxu0 0.0
      %1096 = vmatprep.subr.mxu0 %v1071
      %1097 = vmatpush1.msra.mxu0 %v1070
      %1098 = vmatprep.subr.mxu0 %v1069
      %1099 = vmatpush1.msra.mxu0 %v1068
      %1100 = vmatprep.subr.mxu0 %v1067
      %1101 = vmatpush1.msra.mxu0 %v1066
      %1102 = vmatprep.subr.mxu0 %v1065
      %1103 = vmatpush1.msra.mxu0 %v1064
      %1104 = vmatprep.subr.mxu0 0.0
      %1105 = vmatpush2.msra.mxu0 0.0
      %1106 = vmatprep.subr.mxu0 0.0
      %1107 = vmatpush2.msra.mxu0 0.0
      %1108 = vmatprep.subr.mxu0 0.0
      %1109 = vmatpush2.msra.mxu0 0.0
      %1110 = vmatprep.subr.mxu0 0.0
      %1111 = vmatpush2.msra.mxu0 0.0
      %1112 = vmatprep.subr.mxu0 0.0
      %1113 = vmatpush2.msra.mxu0 0.0
      %1114 = vmatprep.subr.mxu0 0.0
      %1115 = vmatpush2.msra.mxu0 0.0
      %1116 = vmatprep.subr.mxu0 0.0
      %1117 = vmatpush2.msra.mxu0 0.0
      %1118 = vmatprep.subr.mxu0 0.0
      %1119 = vmatpush2.msra.mxu0 0.0
      %1120 = vmatprep.subr.mxu0 0.0
      %1121 = vmatpush2.msra.mxu0 0.0
      %1122 = vmatprep.subr.mxu0 0.0
      %1123 = vmatpush2.msra.mxu0 0.0
      %1124 = vmatprep.subr.mxu0 0.0
      %1125 = vmatpush2.msra.mxu0 0.0
      %1126 = vmatprep.subr.mxu0 0.0
      %1127 = vmatpush2.msra.mxu0 0.0
      %1128 = vmatprep.subr.mxu0 0.0
      %1129 = vmatpush2.msra.mxu0 0.0
      %1130 = vmatprep.subr.mxu0 0.0
      %1131 = vmatpush2.msra.mxu0 0.0
      %1132 = vmatprep.subr.mxu0 0.0
      %1133 = vmatpush2.msra.mxu0 0.0
      %1134 = vmatprep.subr.mxu0 0.0
      %1135 = vmatpush2.msra.mxu0 0.0
      %1136 = vmatprep.mubr.f32.mxu0 0.0
      %1137 = vmatmul.mubr.f32.gmra.mxu0 %v453
      %v1138 = vpop.f32.mrf.mxu0
      %v1139 = vadd.f32 %v449, %v1138
      %v1140 = vpop.f32.mrf.mxu0
      %v1141 = vadd.f32 %v449, %v1140
      %1142 = vdwg.mxu0
      %s1143 = scalar_lea.vmem %s269, 48
      %1144 = vst [vmem:[%s1143] sm:$0xff] %v1139
      %1145 = vst [vmem:[%s1143 + $0x8] sm:$0xff] %v1141
      %s1146 = smul.u32 4, %s20
      %s1147 = smul.u32 2, %s21
      %p1148 = scmp.lt.s32.totalorder %s1146, 7
      %s1149 = scalar_select %p1148, %s1146, 7
      %p1150 = scmp.lt.s32.totalorder %s1147, 1
      %s1151 = scalar_select %p1150, %s1147, 1
      %s1152 = smul.addr %s1149, 2
      %s1153 = sadd.s32 %s1151, %s1152
      %s1154 = smul.addr %s1153, 8
      %s1155 = scalar_lea.vmem %s5, %s1154
      // Predicated region
      $region41: #{afno_block_forward.1} parent=39 // pred_check
        %p1156 = pneg %p160
      $region42: #{afno_block_forward.1} parent=39 // pred_check_branch
        %1158 = sbr.rel (%p1156) target = $region44
      $region43: #{afno_block_forward.1} parent=39 // pred_region
        %s1159 = smul.u32 4, %s20
        %s1160 = smul.u32 2, %s21
      $region44: #{afno_block_forward.1} parent=39 // pred_fallthru
        _
    $region40: #{afno_block_forward.1} parent=5 // pred_fallthru
      _
    %p1161 = scmp.le.s32.totalorder 2, %s11
    // Predicated region
    $region45: #{afno_block_forward.1} parent=5 // pred_check
      %p1162 = pneg %p1161
    $region46: #{afno_block_forward.1} parent=5 // pred_check_branch
      %1164 = sbr.rel (%p1162) target = $region48
    $region47: #{afno_block_forward.1} parent=5 // pred_region
      %s1165 = ssub.s32 %s11, 2
      // Predicated region
      $region49: #{afno_block_forward.1} parent=47 // pred_check
        %p1166 = pneg %p166
      $region50: #{afno_block_forward.1} parent=47 // pred_check_branch
        %1168 = sbr.rel (%p1166) target = $region52
      $region51: #{afno_block_forward.1} parent=47 // pred_region
        %s1169 = smul.u32 4, %s22
        %s1170 = smul.u32 2, %s23
        %p1171 = scmp.lt.s32.totalorder %s1169, 7
        %s1172 = scalar_select %p1171, %s1169, 7
        %p1173 = scmp.lt.s32.totalorder %s1170, 1
        %s1174 = scalar_select %p1173, %s1170, 1
        %s1175 = smul.addr %s1172, 2
        %s1176 = sadd.s32 %s1174, %s1175
        %s1177 = smul.addr %s1176, 8
        %s1178 = scalar_lea.vmem %s5, %s1177
      $region52: #{afno_block_forward.1} parent=47 // pred_fallthru
        _
    $region48: #{afno_block_forward.1} parent=5 // pred_fallthru
      _
  $region6: #{afno_block_forward.1} parent=0 // loop_footer
    %s15 = sadd.s32 1, %s11
  $region7: #{afno_block_forward.1} parent=0 // loop_footer_branch
    %10 = sbr.rel target = $region3
  $region8: #{afno_block_forward.1} parent=0 // loop_exit
    _

</llo_original>
